<compile_context>
chip_gen: v7x
topology: tpu7x:2x2x1
jax: 0.10.0
libtpu: 0.0.40
codegen_flags: <defaults>
</compile_context>

<pallas_src>
import jax
import jax.numpy as jnp
from jax import lax
from jax.experimental import pallas as pl
from jax.experimental.pallas import tpu as pltpu


def _round_up(n: int, m: int) -> int:
    return (n + m - 1) // m * m


def _make_kernel(D: int, row_tile: int, col_chunk: int):
    """Build the kernel with static shape info closed over."""
    n_groups = col_chunk // 128
    ragged = (D % col_chunk) != 0

    def kernel(x_ref, o_ref, acc_ref):
        # x_ref:   (row_tile, col_chunk) tile of the flattened (R, D) input
        # o_ref:   (row_tile, 1) int32 output block (written once per row block)
        # acc_ref: (row_tile, 128) int32 VMEM scratch (lane-group partial sums)
        k = pl.program_id(1)

        @pl.when(k == 0)
        def _():
            acc_ref[...] = jnp.zeros_like(acc_ref)

        nz = x_ref[...] != 0
        if ragged:
            # Mask out-of-range lanes (only the last chunk is actually ragged;
            # for full chunks this evaluates to all-true — cheap VPU filler).
            col_ids = lax.broadcasted_iota(jnp.int32, (row_tile, col_chunk), 1)
            nz = jnp.logical_and(nz, (col_ids + k * col_chunk) < D)

        nz32 = nz.astype(jnp.int32)
        # Sum lane groups into 128 lanes with elementwise adds (VPU only, no
        # cross-lane movement, tile-aligned static slices -> no relayout).
        partial = nz32[:, 0:128]
        for j in range(1, n_groups):
            partial = partial + nz32[:, j * 128:(j + 1) * 128]
        acc_ref[...] += partial

        @pl.when(k == pl.num_programs(1) - 1)
        def _():
            # Single 128 -> 1 cross-lane reduce per row block.
            o_ref[...] = jnp.sum(acc_ref[...], axis=1, keepdims=True,
                                 dtype=jnp.int32)

    return kernel


def count_nonzero_dim2(x: jax.Array, *, force_pallas: bool = False) -> jax.Array:
    """count_nonzero over dim=2 of a rank-3 integer tensor via a Pallas TPU kernel."""
    assert x.ndim == 3, "expected rank-3 input (B, C, D)"
    B, C, D = x.shape

    if x.dtype.itemsize == 8:
        # TODO(synk): no native int64 on the TPU vector units; collapse each 64-bit
        # value to a 32-bit "is-nonzero" word (lo | hi). Costs one extra HBM pass.
        u = lax.bitcast_convert_type(x, jnp.uint32)  # (B, C, D, 2)
        x = u[..., 0] | u[..., 1]

    # Tiny-input fast path: for shapes like the annotated [2, 3, 4] everything is
    # fixed overhead; let XLA fuse it. (The demo forces the Pallas path.)
    if not force_pallas and x.size <= (1 << 16):
        return jnp.sum(x != 0, axis=2, dtype=jnp.int32)

    R = B * C
    itemsize = x.dtype.itemsize

    # ---- generation-aware tiling (lane/sublane aligned, VMEM-bounded) --------
    try:
        vmem_cap = int(getattr(pltpu.get_tpu_info(), "vmem_capacity_bytes",
                               64 << 20))
    except Exception:
        vmem_cap = 64 << 20  # conservative (v7x physical VMEM)
    # Per-block budget: <=16 MiB, and <= VMEM/8 (=> 8 MiB on v7x, 16 MiB on v5e/v6e)
    block_bytes_budget = min(16 << 20, vmem_cap // 8)
    budget_elems = max(8 * 128, block_bytes_budget // itemsize)

    # Column chunk: lane-dense, covers D in one chunk when possible, capped so the
    # per-chunk lane-group fan-in stays modest.
    col_chunk = min(_round_up(D, 128), 4096)

    # Row tile: multiple of 8, sized to the block budget; keep >=2 row blocks when
    # R permits so dimension_semantics=("parallel", ...) can use both v7x cores.
    rows_budget = max(8, (budget_elems // col_chunk) // 8 * 8)
    R8 = _round_up(R, 8)
    row_tile = min(R8, rows_budget)
    if R8 >= 16:
        row_tile = min(row_tile, max(8, (R8 // 2) // 8 * 8))

    grid = (pl.cdiv(R, row_tile), pl.cdiv(D, col_chunk))

    block_bytes = row_tile * col_chunk * itemsize
    scratch_bytes = row_tile * 128 * 4
    vmem_limit = int(min(vmem_cap,
                         max(32 << 20, 2 * block_bytes + scratch_bytes + (4 << 20))))

    x2 = x.reshape(R, D)  # no padding: ragged edges handled by mask / partial blocks

    out = pl.pallas_call(
        _make_kernel(D, row_tile, col_chunk),
        out_shape=jax.ShapeDtypeStruct((R, 1), jnp.int32),
        grid_spec=pltpu.PrefetchScalarGridSpec(
            num_scalar_prefetch=0,
            grid=grid,
            in_specs=[pl.BlockSpec((row_tile, col_chunk), lambda r, k: (r, k))],
            out_specs=pl.BlockSpec((row_tile, 1), lambda r, k: (r, 0)),
            scratch_shapes=[pltpu.VMEM((row_tile, 128), jnp.int32)],
        ),
        compiler_params=pltpu.CompilerParams(
            dimension_semantics=("parallel", "arbitrary"),
            vmem_limit_bytes=vmem_limit,
        ),
        cost_estimate=pl.CostEstimate(
            flops=R * D,
            transcendentals=0,
            bytes_accessed=R * D * itemsize + R * 4,
        ),
    )(x2)

    return out[:, 0].reshape(B, C)


if __name__ == "__main__":
    key = jax.random.PRNGKey(0)
    k0, k1 = jax.random.split(key)

    # Annotated [2, 3, 4] integer input with a mix of zero and nonzero values.
    # (int32 stand-in for int64: JAX x64 is disabled by default.)
    x = jax.random.randint(k0, (2, 3, 4), minval=-2, maxval=3, dtype=jnp.int32)
    out = jax.block_until_ready(count_nonzero_dim2(x, force_pallas=True))
    ref = jnp.sum(x != 0, axis=2, dtype=jnp.int32)
    assert out.shape == (2, 3), out.shape
    assert out.dtype == jnp.int32, out.dtype
    assert jnp.array_equal(out, ref), (out, ref)

    # Slightly larger, unaligned shape: exercises the ragged lane mask, a partial
    # last row block, and a multi-block row grid.
    y = jax.random.randint(k1, (4, 7, 333), minval=-1, maxval=2, dtype=jnp.int32)
    out2 = jax.block_until_ready(count_nonzero_dim2(y, force_pallas=True))
    ref2 = jnp.sum(y != 0, axis=2, dtype=jnp.int32)
    assert jnp.array_equal(out2, ref2), (out2, ref2)

    print("KERNEL_OK")
</pallas_src>

<mosaic_0001>
module attributes {stable_mosaic.version = 11 : i64} {
  func.func @kernel(%arg0: i32, %arg1: i32, %arg2: memref<8x128xi32, #tpu.memory_space<vmem>>, %arg3: memref<8x1xi32, #tpu.memory_space<vmem>>, %arg4: memref<8x128xi32, #tpu.memory_space<vmem>>) attributes {dimension_semantics = [#tpu.dimension_semantics<parallel>, #tpu.dimension_semantics<arbitrary>], iteration_bounds = array<i64: 1, 1>, scalar_prefetch = 0 : i64, scratch_operands = 1 : i64, tpu.core_type = #tpu.core_type<tc>, window_params = [{transform_indices = @transform_0, window_bounds = array<i64: 8, 128>}, {transform_indices = @transform_1, window_bounds = array<i64: 8, 1>}]} {
    %c0_i32 = arith.constant 0 : i32
    %0 = arith.cmpi eq, %arg1, %c0_i32 : i32
    %1 = arith.extui %0 : i1 to i32
    %c0_i32_0 = arith.constant 0 : i32
    %2 = arith.cmpi ne, %1, %c0_i32_0 : i32
    scf.if %2 {
      %c0_i32_9 = arith.constant 0 : i32
      %20 = vector.broadcast %c0_i32_9 : i32 to vector<8x128xi32>
      %c0_10 = arith.constant 0 : index
      %c0_11 = arith.constant 0 : index
      %21 = vector.load %arg4[%c0_10, %c0_11] : memref<8x128xi32, #tpu.memory_space<vmem>>, vector<8x128xi32>
      tpu.vector_store %arg4[%c0_10, %c0_11], %20 {strides = array<i32>} : memref<8x128xi32, #tpu.memory_space<vmem>>, vector<8x128xi32>,
    } else {
    }
    %c0 = arith.constant 0 : index
    %c0_1 = arith.constant 0 : index
    %3 = vector.load %arg2[%c0, %c0_1] : memref<8x128xi32, #tpu.memory_space<vmem>>, vector<8x128xi32>
    %c0_i32_2 = arith.constant 0 : i32
    %4 = vector.broadcast %c0_i32_2 : i32 to vector<8x128xi32>
    %5 = arith.cmpi ne, %3, %4 : vector<8x128xi32>
    %6 = tpu.iota {dimensions = array<i32: 1>} : vector<8x128xi32>
    %c128_i32 = arith.constant 128 : i32
    %7 = arith.muli %arg1, %c128_i32 : i32
    %8 = vector.broadcast %7 : i32 to vector<8x128xi32>
    %9 = arith.addi %6, %8 : vector<8x128xi32>
    %c4_i32 = arith.constant 4 : i32
    %10 = vector.broadcast %c4_i32 : i32 to vector<8x128xi32>
    %11 = arith.cmpi slt, %9, %10 : vector<8x128xi32>
    %12 = arith.andi %5, %11 : vector<8x128xi1>
    %13 = arith.extui %12 : vector<8x128xi1> to vector<8x128xi32>
    %c0_3 = arith.constant 0 : index
    %c0_4 = arith.constant 0 : index
    %14 = vector.load %arg4[%c0_3, %c0_4] : memref<8x128xi32, #tpu.memory_space<vmem>>, vector<8x128xi32>
    %15 = arith.addi %14, %13 : vector<8x128xi32>
    %c0_5 = arith.constant 0 : index
    %c0_6 = arith.constant 0 : index
    %16 = vector.load %arg4[%c0_5, %c0_6] : memref<8x128xi32, #tpu.memory_space<vmem>>, vector<8x128xi32>
    tpu.vector_store %arg4[%c0_5, %c0_6], %15 {strides = array<i32>} : memref<8x128xi32, #tpu.memory_space<vmem>>, vector<8x128xi32>,
    %c0_i32_7 = arith.constant 0 : i32
    %17 = arith.cmpi eq, %arg1, %c0_i32_7 : i32
    %18 = arith.extui %17 : i1 to i32
    %c0_i32_8 = arith.constant 0 : i32
    %19 = arith.cmpi ne, %18, %c0_i32_8 : i32
    scf.if %19 {
      %c0_9 = arith.constant 0 : index
      %c0_10 = arith.constant 0 : index
      %20 = vector.load %arg4[%c0_9, %c0_10] : memref<8x128xi32, #tpu.memory_space<vmem>>, vector<8x128xi32>
      %cst = arith.constant dense<0> : vector<8xi32>
      %21 = vector.multi_reduction <add>, %20, %cst [1] : vector<8x128xi32> to vector<8xi32>
      %22 = vector.shape_cast %21 : vector<8xi32> to vector<8x1xi32>
      %c0_11 = arith.constant 0 : index
      %c0_12 = arith.constant 0 : index
      %23 = vector.load %arg3[%c0_11, %c0_12] : memref<8x1xi32, #tpu.memory_space<vmem>>, vector<8x1xi32>
      tpu.vector_store %arg3[%c0_11, %c0_12], %22 {strides = array<i32>} : memref<8x1xi32, #tpu.memory_space<vmem>>, vector<8x1xi32>,
    } else {
    }
    return
  }
  func.func @transform_0(%arg0: i32, %arg1: i32) -> (i32, i32) {
    %c0_i32 = arith.constant 0 : i32
    return %arg0, %arg1 : i32, i32
  }
  func.func @transform_1(%arg0: i32, %arg1: i32) -> (i32, i32) {
    %c0_i32 = arith.constant 0 : i32
    %c0_i32_0 = arith.constant 0 : i32
    return %arg0, %c0_i32 : i32, i32
  }
}

</mosaic_0001>

<llo_original>
// kernel: tpu_custom_call.1
$region0: #{tpu_custom_call.1}
  #allocation0 [shape = 'u32[]', space=smem, size = 0x4, offset = 0x4, fixed_abs, tag = 'smem constant byte address 0x4 - core index']
  #allocation1 [shape = 'u32[144,128]{1,0:T(1,128)}', space=vmem, size = 0x12000, scoped, tag = 'internal scratch']
  #allocation2 [shape = 's32[8,128]{1,0:T(8,128)}', space=vmem, size = 0x1000, scoped, tag = 'scratch operand']
  %s0 = inlined_call_operand.vmem [shape: s32[6,4], index: 0, kind: input, shape index: {}]
  %s1 = inlined_call_operand.vmem [shape: s32[6,1], index: 1, kind: output, shape index: {}]
  %s2 = sld [smem:[#allocation0]]
  $region22: #{tpu_custom_call.1} parent=0
    _
  %s4 = ssub.s32 1, %s2
  %s5 = scalar_select 0, %s4, %s2
  // Predicated region
  $region2: #{tpu_custom_call.1} parent=0 // pred_check
    _
  $region3: #{tpu_custom_call.1} parent=0 // pred_check_branch
    %7 = sbr.rel (0) target = $region5
  $region4: #{tpu_custom_call.1} parent=0 // pred_region
    _
  $region5: #{tpu_custom_call.1} parent=0 // pred_fallthru
    _
  %p8 = scmp.eq.s32.totalorder 0, 0
  // Predicated region
  $region6: #{tpu_custom_call.1} parent=0 // pred_check
    %p9 = pneg %p8
  $region7: #{tpu_custom_call.1} parent=0 // pred_check_branch
    %11 = sbr.rel (%p9) target = $region9
  $region8: #{tpu_custom_call.1} parent=0 // pred_region
    %12 = vst [vmem:[#allocation2] sm:$0xff] 0
  $region9: #{tpu_custom_call.1} parent=0 // pred_fallthru
    _
  %v13 = vld [vmem:[%s0] sm:$0xff]
  %vm14 = vcmp.ne.s32.totalorder %v13, 0
  %v15 = vlaneseq
  %v16 = vand.u32 %v15, 127
  %s17 = smul.u32 0, 128
  %v18 = vstv %s17
  %v19 = vadd.s32 %v16, %v18
  %vm20 = vcmp.lt.s32.totalorder %v19, 4
  %vm21 = vmand %vm14, %vm20
  %v22 = vsel %vm21, 1, 0
  %v23 = vld [vmem:[#allocation2] sm:$0xff]
  %v24 = vadd.s32 %v23, %v22
  %25 = vst [vmem:[#allocation2] sm:$0xff] %v24
  // Predicated region
  $region10: #{tpu_custom_call.1} parent=0 // pred_check
    %p26 = pneg %p8
  $region11: #{tpu_custom_call.1} parent=0 // pred_check_branch
    %28 = sbr.rel (%p26) target = $region13
  $region12: #{tpu_custom_call.1} parent=0 // pred_region
    %v29 = vld [vmem:[#allocation2] sm:$0xff]
    %v30 = vand.u32 %v29, 65535
    %v31 = vshrl.u32 %v29, 16
    %v32 = vcvt.s32.f32 %v30
    %v33 = vcvt.s32.f32 %v31
    %34 = vadd.xlane.f32.xlu0 %v32
    %v35 = vpop.xlane.xlu0 %34
    %36 = vadd.xlane.f32.xlu0 %v33
    %v37 = vpop.xlane.xlu0 %36
    %v38 = vcvt.f32.s32 %v35
    %v39 = vcvt.f32.s32 %v37
    %v40 = vshll.u32 %v39, 16
    %v41 = vadd.s32 %v40, %v38
    %vm42 = vcmask 7168
    %43 = vst.msk [vmem:[%s1] sm:$0xff] %vm42, %v41
  $region13: #{tpu_custom_call.1} parent=0 // pred_fallthru
    _
  // Predicated region
  $region14: #{tpu_custom_call.1} parent=0 // pred_check
    _
  $region15: #{tpu_custom_call.1} parent=0 // pred_check_branch
    %45 = sbr.rel (0) target = $region17
  $region16: #{tpu_custom_call.1} parent=0 // pred_region
    _
  $region17: #{tpu_custom_call.1} parent=0 // pred_fallthru
    _
  // Predicated region
  $region18: #{tpu_custom_call.1} parent=0 // pred_check
    _
  $region19: #{tpu_custom_call.1} parent=0 // pred_check_branch
    %47 = sbr.rel (0) target = $region21
  $region20: #{tpu_custom_call.1} parent=0 // pred_region
    _
  $region21: #{tpu_custom_call.1} parent=0 // pred_fallthru
    _

</llo_original>
